<compile_context>
chip_gen: v7x
topology: tpu7x:2x2x1
jax: 0.10.0
libtpu: 0.0.40
codegen_flags: <defaults>
</compile_context>

<pallas_src>
import jax
import jax.numpy as jnp
from jax.experimental import pallas as pl
from jax.experimental.pallas import tpu as pltpu

EPS = 1e-5  # nn.LayerNorm default eps


def _round_up(x, m):
    return ((x + m - 1) // m) * m


def _layer_norm(x, gamma, beta):
    # Single-pass LayerNorm: one fewer dependent XLU reduction per call.
    # (eps stays inside rsqrt; biased variance, matching nn.LayerNorm.)
    n = x.shape[-1]
    mean = jnp.sum(x, axis=-1, keepdims=True) * (1.0 / n)
    ex2 = jnp.sum(x * x, axis=-1, keepdims=True) * (1.0 / n)
    var = ex2 - mean * mean
    inv = jax.lax.rsqrt(var + EPS)
    return (x - mean) * inv * gamma + beta


def critic_kernel(
    state_ref,   # (TB, input_dims)          VMEM, batch-streamed
    action_ref,  # (TB, n_actions)           VMEM, batch-streamed
    w1_ref,      # (input_dims, fc1_dims)    VMEM (resident across steps)
    vec1_ref,    # (3, fc1_dims) = [b1; g1; be1]  f32, resident
    w2_ref,      # (fc1_dims, fc2_dims)      VMEM (resident)
    wa_ref,      # (n_actions, fc2_dims)     VMEM (resident)
    vec2_ref,    # (5, fc2_dims) = [b2; g2; be2; ba; wq_row]  f32, resident
    bq_ref,      # (1, 1)                    SMEM scalar
    out_ref,     # (1, 1, TB)                lane-dense q row for this tile
):
    cdt = w1_ref.dtype  # matmul compute dtype (f32 or bf16)
    state = state_ref[...].astype(cdt)
    action = action_ref[...].astype(cdt)

    b1 = vec1_ref[0:1, :]
    g1 = vec1_ref[1:2, :]
    be1 = vec1_ref[2:3, :]

    b2 = vec2_ref[0:1, :]
    g2 = vec2_ref[1:2, :]
    be2 = vec2_ref[2:3, :]
    ba = vec2_ref[3:4, :]
    wq_row = vec2_ref[4:5, :]

    # fc1 -> LayerNorm -> relu      (accumulate in f32)
    sv = jnp.dot(state, w1_ref[...], preferred_element_type=jnp.float32) + b1
    sv = _layer_norm(sv, g1, be1)
    sv = jnp.maximum(sv, 0.0)

    # fc2 -> LayerNorm
    sv = jnp.dot(sv.astype(cdt), w2_ref[...],
                 preferred_element_type=jnp.float32) + b2
    sv = _layer_norm(sv, g2, be2)

    # action branch: Linear -> relu
    av = jnp.dot(action, wa_ref[...], preferred_element_type=jnp.float32) + ba
    av = jnp.maximum(av, 0.0)

    # merge + relu, then the q head as a contraction over fc2 that produces a
    # lane-dense (1, TB) row directly (avoids a (TB,1) column of masked stores).
    sav = jnp.maximum(sv + av, 0.0)
    q_row = jax.lax.dot_general(
        wq_row, sav,                       # (1, fc2) x (TB, fc2) -> (1, TB)
        dimension_numbers=(((1,), (1,)), ((), ())),
        preferred_element_type=jnp.float32,
    ) + bq_ref[0, 0]
    out_ref[...] = q_row.reshape(out_ref.shape).astype(out_ref.dtype)


def pack_params(params, *, compute_dtype=jnp.float32):
    """One-time packing of the small per-layer vectors (hoisted out of the
    per-call hot path) and optional bf16 cast of the matmul weights."""
    fc2_dims = params["w2"].shape[1]
    vec1 = jnp.concatenate(
        [params["b1"], params["g1"], params["be1"]], axis=0
    ).astype(jnp.float32)                                   # (3, fc1)
    vec2 = jnp.concatenate(
        [
            params["b2"],
            params["g2"],
            params["be2"],
            params["ba"],
            params["wq"].reshape(1, fc2_dims),              # q weight, lane-dense row
        ],
        axis=0,
    ).astype(jnp.float32)                                   # (5, fc2)
    return {
        "w1": params["w1"].astype(compute_dtype),
        "w2": params["w2"].astype(compute_dtype),
        "wa": params["wa"].astype(compute_dtype),
        "vec1": vec1,
        "vec2": vec2,
        "bq": params["bq"].reshape(1, 1).astype(jnp.float32),
    }


def _choose_batch_tile(B, max_batch_tile):
    """Batch rows per grid step."""
    if B <= 8:
        return B  # full-extent block (legal for any B), single grid step
    # >= 2 grid steps so both v7x TensorCores get work; otherwise as big as the
    # cap allows to amortize the ~0.35us per-step pipeline overhead.  VMEM is
    # nowhere near binding at these feature dims.
    tb = _round_up(pl.cdiv(B, 2), 8)
    tb = min(tb, max(8, _round_up(max_batch_tile, 8)))
    return tb


def critic_forward(state, action, packed, *, max_batch_tile=2048):
    """Whole critic forward in one pallas_call, pipelined over the batch.

    `packed` comes from pack_params().  For the full HBM-traffic benefit of
    bf16 weights, pass state/action already in bf16; otherwise they are cast
    in-kernel (MXU still runs at bf16 rate)."""
    B, input_dims = state.shape
    n_actions = action.shape[1]
    fc1_dims = packed["w1"].shape[1]
    fc2_dims = packed["w2"].shape[1]

    TB = _choose_batch_tile(B, max_batch_tile)
    num_tiles = pl.cdiv(B, TB)     # partial last block; no jnp.pad of the batch
    grid = (num_tiles,)

    in_specs = [
        pl.BlockSpec((TB, input_dims), lambda i: (i, 0)),        # state: batch-blocked
        pl.BlockSpec((TB, n_actions), lambda i: (i, 0)),         # action: batch-blocked
        pl.BlockSpec((input_dims, fc1_dims), lambda i: (0, 0)),  # w1: resident
        pl.BlockSpec((3, fc1_dims), lambda i: (0, 0)),           # vec1: resident
        pl.BlockSpec((fc1_dims, fc2_dims), lambda i: (0, 0)),    # w2: resident
        pl.BlockSpec((n_actions, fc2_dims), lambda i: (0, 0)),   # wa: resident
        pl.BlockSpec((5, fc2_dims), lambda i: (0, 0)),           # vec2: resident
        pl.BlockSpec(memory_space=pltpu.MemorySpace.SMEM),       # bq scalar
    ]
    # Lane-dense output: one (1, 1, TB) row per grid step.
    out_spec = pl.BlockSpec((1, 1, TB), lambda i: (i, 0, 0))

    out = pl.pallas_call(
        critic_kernel,
        out_shape=jax.ShapeDtypeStruct((num_tiles, 1, TB), jnp.float32),
        grid=grid,
        in_specs=in_specs,
        out_specs=out_spec,
        compiler_params=pltpu.CompilerParams(
            dimension_semantics=("parallel",),  # shard batch tiles across TCs (v7x)
        ),
    )(state, action, packed["w1"], packed["vec1"], packed["w2"],
      packed["wa"], packed["vec2"], packed["bq"])

    # tile-major row-major flatten maps (tile, lane) -> batch row tile*TB + lane
    return out.reshape(num_tiles * TB)[:B].reshape(B, 1)


def init_params(key, input_dims, fc1_dims, fc2_dims, n_actions):
    """Deterministic synthetic init mirroring the module's __init__ shapes."""
    ks = jax.random.split(key, 8)
    f1 = 1.0 / jnp.sqrt(jnp.float32(fc1_dims))   # 1/sqrt(fc1.weight.size(0))
    f2 = 1.0 / jnp.sqrt(jnp.float32(fc2_dims))   # 1/sqrt(fc2.weight.size(0))
    f3 = 0.003
    fa = 1.0 / jnp.sqrt(jnp.float32(n_actions))  # PyTorch default Linear init bound

    def u(k, shape, bound):
        return jax.random.uniform(k, shape, jnp.float32, -bound, bound)

    return {
        "w1": u(ks[0], (input_dims, fc1_dims), f1),
        "b1": u(ks[1], (1, fc1_dims), f1),
        "g1": jnp.ones((1, fc1_dims), jnp.float32),
        "be1": jnp.zeros((1, fc1_dims), jnp.float32),
        "w2": u(ks[2], (fc1_dims, fc2_dims), f2),
        "b2": u(ks[3], (1, fc2_dims), f2),
        "g2": jnp.ones((1, fc2_dims), jnp.float32),
        "be2": jnp.zeros((1, fc2_dims), jnp.float32),
        "wa": u(ks[4], (n_actions, fc2_dims), fa),
        "ba": u(ks[5], (1, fc2_dims), fa),
        "wq": u(ks[6], (fc2_dims, 1), f3),
        "bq": u(ks[7], (1, 1), f3),
    }


def _layer_norm_ref(x, gamma, beta):
    # Two-pass reference (PyTorch semantics) for validation.
    mean = jnp.mean(x, axis=-1, keepdims=True)
    var = jnp.mean((x - mean) * (x - mean), axis=-1, keepdims=True)
    return (x - mean) * jax.lax.rsqrt(var + EPS) * gamma + beta


def reference_forward(state, action, p):
    sv = state @ p["w1"] + p["b1"]
    sv = _layer_norm_ref(sv, p["g1"], p["be1"])
    sv = jnp.maximum(sv, 0.0)
    sv = sv @ p["w2"] + p["b2"]
    sv = _layer_norm_ref(sv, p["g2"], p["be2"])
    av = jnp.maximum(action @ p["wa"] + p["ba"], 0.0)
    sav = jnp.maximum(sv + av, 0.0)
    return sav @ p["wq"] + p["bq"]


if __name__ == "__main__":
    # Small shapes consistent with the module's forward.
    batch = 4
    input_dims = 16
    fc1_dims = 32
    fc2_dims = 32
    n_actions = 8

    key = jax.random.PRNGKey(0)
    k_state, k_action, k_params, k_big = jax.random.split(key, 4)
    state = jax.random.normal(k_state, (batch, input_dims), jnp.float32)
    action = jax.random.normal(k_action, (batch, n_actions), jnp.float32)
    params = init_params(k_params, input_dims, fc1_dims, fc2_dims, n_actions)

    # Pack once, reuse across calls (packing hoisted out of the hot path).
    packed_f32 = pack_params(params)

    q = jax.block_until_ready(critic_forward(state, action, packed_f32))
    q_ref = reference_forward(state, action, params)
    assert q.shape == (batch, 1)
    assert jnp.allclose(q, q_ref, atol=1e-4, rtol=1e-4), (q, q_ref)

    # Larger, non-multiple batch: multi-tile grid (>=2 steps for v7x), partial
    # last block (no jnp.pad), f32 path at tight tolerance.
    kb_s, kb_a = jax.random.split(k_big)
    big_B = 300
    big_state = jax.random.normal(kb_s, (big_B, input_dims), jnp.float32)
    big_action = jax.random.normal(kb_a, (big_B, n_actions), jnp.float32)
    q_big_ref = reference_forward(big_state, big_action, params)

    q_big_f32 = jax.block_until_ready(
        critic_forward(big_state, big_action, packed_f32))
    assert q_big_f32.shape == (big_B, 1)
    assert jnp.allclose(q_big_f32, q_big_ref, atol=1e-4, rtol=1e-4)

    # bf16 matmul operands (weights packed in bf16, bf16 streamed inputs),
    # accumulation still f32 -> looser tolerance vs the f32 reference.
    packed_bf16 = pack_params(params, compute_dtype=jnp.bfloat16)
    q_big_bf16 = jax.block_until_ready(
        critic_forward(big_state.astype(jnp.bfloat16),
                       big_action.astype(jnp.bfloat16),
                       packed_bf16))
    assert q_big_bf16.shape == (big_B, 1)
    assert jnp.allclose(q_big_bf16, q_big_ref, atol=2e-2, rtol=2e-2)

    print("KERNEL_OK")
</pallas_src>

<mosaic_0001>
module attributes {stable_mosaic.version = 11 : i64} {
  func.func @critic_kernel(%arg0: i32, %arg1: memref<4x16xf32, #tpu.memory_space<vmem>>, %arg2: memref<4x8xf32, #tpu.memory_space<vmem>>, %arg3: memref<16x32xf32, #tpu.memory_space<vmem>>, %arg4: memref<3x32xf32, #tpu.memory_space<vmem>>, %arg5: memref<32x32xf32, #tpu.memory_space<vmem>>, %arg6: memref<8x32xf32, #tpu.memory_space<vmem>>, %arg7: memref<5x32xf32, #tpu.memory_space<vmem>>, %arg8: memref<1x1xf32, #tpu.memory_space<smem>>, %arg9: memref<1x1x4xf32, #tpu.memory_space<vmem>>) attributes {dimension_semantics = [#tpu.dimension_semantics<parallel>], iteration_bounds = array<i64: 1>, scalar_prefetch = 0 : i64, scratch_operands = 0 : i64, tpu.core_type = #tpu.core_type<tc>, window_params = [{transform_indices = @transform_0, window_bounds = array<i64: 4, 16>}, {transform_indices = @transform_1, window_bounds = array<i64: 4, 8>}, {pipeline_mode = #tpu.pipeline_mode<synchronous>, transform_indices = @transform_2, window_bounds = array<i64: 16, 32>}, {pipeline_mode = #tpu.pipeline_mode<synchronous>, transform_indices = @transform_3, window_bounds = array<i64: 3, 32>}, {pipeline_mode = #tpu.pipeline_mode<synchronous>, transform_indices = @transform_4, window_bounds = array<i64: 32, 32>}, {pipeline_mode = #tpu.pipeline_mode<synchronous>, transform_indices = @transform_5, window_bounds = array<i64: 8, 32>}, {pipeline_mode = #tpu.pipeline_mode<synchronous>, transform_indices = @transform_6, window_bounds = array<i64: 5, 32>}, {transform_indices = @transform_7, window_bounds = array<i64: 1, 1>}, {transform_indices = @transform_8, window_bounds = array<i64: 1, 1, 4>}]} {
    %c0 = arith.constant 0 : index
    %c0_0 = arith.constant 0 : index
    %0 = vector.load %arg1[%c0, %c0_0] : memref<4x16xf32, #tpu.memory_space<vmem>>, vector<4x16xf32>
    %c0_1 = arith.constant 0 : index
    %c0_2 = arith.constant 0 : index
    %1 = vector.load %arg2[%c0_1, %c0_2] : memref<4x8xf32, #tpu.memory_space<vmem>>, vector<4x8xf32>
    %c0_3 = arith.constant 0 : index
    %c0_4 = arith.constant 0 : index
    %2 = vector.load %arg4[%c0_3, %c0_4] : memref<3x32xf32, #tpu.memory_space<vmem>>, vector<1x32xf32>
    %c1 = arith.constant 1 : index
    %c0_5 = arith.constant 0 : index
    %3 = vector.load %arg4[%c1, %c0_5] : memref<3x32xf32, #tpu.memory_space<vmem>>, vector<1x32xf32>
    %c2 = arith.constant 2 : index
    %c0_6 = arith.constant 0 : index
    %4 = vector.load %arg4[%c2, %c0_6] : memref<3x32xf32, #tpu.memory_space<vmem>>, vector<1x32xf32>
    %c0_7 = arith.constant 0 : index
    %c0_8 = arith.constant 0 : index
    %5 = vector.load %arg7[%c0_7, %c0_8] : memref<5x32xf32, #tpu.memory_space<vmem>>, vector<1x32xf32>
    %c1_9 = arith.constant 1 : index
    %c0_10 = arith.constant 0 : index
    %6 = vector.load %arg7[%c1_9, %c0_10] : memref<5x32xf32, #tpu.memory_space<vmem>>, vector<1x32xf32>
    %c2_11 = arith.constant 2 : index
    %c0_12 = arith.constant 0 : index
    %7 = vector.load %arg7[%c2_11, %c0_12] : memref<5x32xf32, #tpu.memory_space<vmem>>, vector<1x32xf32>
    %c3 = arith.constant 3 : index
    %c0_13 = arith.constant 0 : index
    %8 = vector.load %arg7[%c3, %c0_13] : memref<5x32xf32, #tpu.memory_space<vmem>>, vector<1x32xf32>
    %c4 = arith.constant 4 : index
    %c0_14 = arith.constant 0 : index
    %9 = vector.load %arg7[%c4, %c0_14] : memref<5x32xf32, #tpu.memory_space<vmem>>, vector<1x32xf32>
    %c0_15 = arith.constant 0 : index
    %c0_16 = arith.constant 0 : index
    %10 = vector.load %arg3[%c0_15, %c0_16] : memref<16x32xf32, #tpu.memory_space<vmem>>, vector<16x32xf32>
    %cst = arith.constant dense<0.000000e+00> : vector<4x32xf32>
    %11 = tpu.matmul %0, %10, %cst {dimension_numbers = #tpu.dot_dimension_numbers<[1], [0], [0], [1], [0, 0, 1, 1], [], []>} : vector<4x16xf32>, vector<16x32xf32>, vector<4x32xf32> -> vector<4x32xf32>
    %12 = vector.broadcast %2 : vector<1x32xf32> to vector<4x32xf32>
    %13 = arith.addf %11, %12 : vector<4x32xf32>
    %cst_17 = arith.constant dense<0.000000e+00> : vector<4xf32>
    %14 = vector.multi_reduction <add>, %13, %cst_17 [1] : vector<4x32xf32> to vector<4xf32>
    %15 = vector.shape_cast %14 : vector<4xf32> to vector<4x1xf32>
    %cst_18 = arith.constant 3.125000e-02 : f32
    %16 = vector.broadcast %cst_18 : f32 to vector<4x1xf32>
    %17 = arith.mulf %15, %16 : vector<4x1xf32>
    %18 = arith.mulf %13, %13 : vector<4x32xf32>
    %cst_19 = arith.constant dense<0.000000e+00> : vector<4xf32>
    %19 = vector.multi_reduction <add>, %18, %cst_19 [1] : vector<4x32xf32> to vector<4xf32>
    %20 = vector.shape_cast %19 : vector<4xf32> to vector<4x1xf32>
    %cst_20 = arith.constant 3.125000e-02 : f32
    %21 = vector.broadcast %cst_20 : f32 to vector<4x1xf32>
    %22 = arith.mulf %20, %21 : vector<4x1xf32>
    %23 = arith.mulf %17, %17 : vector<4x1xf32>
    %24 = arith.subf %22, %23 : vector<4x1xf32>
    %cst_21 = arith.constant 9.99999974E-6 : f32
    %25 = vector.broadcast %cst_21 : f32 to vector<4x1xf32>
    %26 = arith.addf %24, %25 : vector<4x1xf32>
    %27 = math.rsqrt %26 : vector<4x1xf32>
    %28 = vector.broadcast %17 : vector<4x1xf32> to vector<4x32xf32>
    %29 = arith.subf %13, %28 : vector<4x32xf32>
    %30 = vector.broadcast %27 : vector<4x1xf32> to vector<4x32xf32>
    %31 = arith.mulf %29, %30 : vector<4x32xf32>
    %32 = vector.broadcast %3 : vector<1x32xf32> to vector<4x32xf32>
    %33 = arith.mulf %31, %32 : vector<4x32xf32>
    %34 = vector.broadcast %4 : vector<1x32xf32> to vector<4x32xf32>
    %35 = arith.addf %33, %34 : vector<4x32xf32>
    %cst_22 = arith.constant 0.000000e+00 : f32
    %36 = vector.broadcast %cst_22 : f32 to vector<4x32xf32>
    %37 = arith.maximumf %35, %36 : vector<4x32xf32>
    %c0_23 = arith.constant 0 : index
    %c0_24 = arith.constant 0 : index
    %38 = vector.load %arg5[%c0_23, %c0_24] : memref<32x32xf32, #tpu.memory_space<vmem>>, vector<32x32xf32>
    %cst_25 = arith.constant dense<0.000000e+00> : vector<4x32xf32>
    %39 = tpu.matmul %37, %38, %cst_25 {dimension_numbers = #tpu.dot_dimension_numbers<[1], [0], [0], [1], [0, 0, 1, 1], [], []>} : vector<4x32xf32>, vector<32x32xf32>, vector<4x32xf32> -> vector<4x32xf32>
    %40 = vector.broadcast %5 : vector<1x32xf32> to vector<4x32xf32>
    %41 = arith.addf %39, %40 : vector<4x32xf32>
    %cst_26 = arith.constant dense<0.000000e+00> : vector<4xf32>
    %42 = vector.multi_reduction <add>, %41, %cst_26 [1] : vector<4x32xf32> to vector<4xf32>
    %43 = vector.shape_cast %42 : vector<4xf32> to vector<4x1xf32>
    %cst_27 = arith.constant 3.125000e-02 : f32
    %44 = vector.broadcast %cst_27 : f32 to vector<4x1xf32>
    %45 = arith.mulf %43, %44 : vector<4x1xf32>
    %46 = arith.mulf %41, %41 : vector<4x32xf32>
    %cst_28 = arith.constant dense<0.000000e+00> : vector<4xf32>
    %47 = vector.multi_reduction <add>, %46, %cst_28 [1] : vector<4x32xf32> to vector<4xf32>
    %48 = vector.shape_cast %47 : vector<4xf32> to vector<4x1xf32>
    %cst_29 = arith.constant 3.125000e-02 : f32
    %49 = vector.broadcast %cst_29 : f32 to vector<4x1xf32>
    %50 = arith.mulf %48, %49 : vector<4x1xf32>
    %51 = arith.mulf %45, %45 : vector<4x1xf32>
    %52 = arith.subf %50, %51 : vector<4x1xf32>
    %cst_30 = arith.constant 9.99999974E-6 : f32
    %53 = vector.broadcast %cst_30 : f32 to vector<4x1xf32>
    %54 = arith.addf %52, %53 : vector<4x1xf32>
    %55 = math.rsqrt %54 : vector<4x1xf32>
    %56 = vector.broadcast %45 : vector<4x1xf32> to vector<4x32xf32>
    %57 = arith.subf %41, %56 : vector<4x32xf32>
    %58 = vector.broadcast %55 : vector<4x1xf32> to vector<4x32xf32>
    %59 = arith.mulf %57, %58 : vector<4x32xf32>
    %60 = vector.broadcast %6 : vector<1x32xf32> to vector<4x32xf32>
    %61 = arith.mulf %59, %60 : vector<4x32xf32>
    %62 = vector.broadcast %7 : vector<1x32xf32> to vector<4x32xf32>
    %63 = arith.addf %61, %62 : vector<4x32xf32>
    %c0_31 = arith.constant 0 : index
    %c0_32 = arith.constant 0 : index
    %64 = vector.load %arg6[%c0_31, %c0_32] : memref<8x32xf32, #tpu.memory_space<vmem>>, vector<8x32xf32>
    %cst_33 = arith.constant dense<0.000000e+00> : vector<4x32xf32>
    %65 = tpu.matmul %1, %64, %cst_33 {dimension_numbers = #tpu.dot_dimension_numbers<[1], [0], [0], [1], [0, 0, 1, 1], [], []>} : vector<4x8xf32>, vector<8x32xf32>, vector<4x32xf32> -> vector<4x32xf32>
    %66 = vector.broadcast %8 : vector<1x32xf32> to vector<4x32xf32>
    %67 = arith.addf %65, %66 : vector<4x32xf32>
    %cst_34 = arith.constant 0.000000e+00 : f32
    %68 = vector.broadcast %cst_34 : f32 to vector<4x32xf32>
    %69 = arith.maximumf %67, %68 : vector<4x32xf32>
    %70 = arith.addf %63, %69 : vector<4x32xf32>
    %cst_35 = arith.constant 0.000000e+00 : f32
    %71 = vector.broadcast %cst_35 : f32 to vector<4x32xf32>
    %72 = arith.maximumf %70, %71 : vector<4x32xf32>
    %cst_36 = arith.constant dense<0.000000e+00> : vector<1x4xf32>
    %73 = tpu.matmul %9, %72, %cst_36 {dimension_numbers = #tpu.dot_dimension_numbers<[1], [1], [0], [0], [0, 0, 1, 0], [], []>} : vector<1x32xf32>, vector<4x32xf32>, vector<1x4xf32> -> vector<1x4xf32>
    %c0_37 = arith.constant 0 : index
    %c0_38 = arith.constant 0 : index
    %74 = memref.load %arg8[%c0_37, %c0_38] : memref<1x1xf32, #tpu.memory_space<smem>>
    %75 = vector.broadcast %74 : f32 to vector<1x4xf32>
    %76 = arith.addf %73, %75 : vector<1x4xf32>
    %77 = vector.shape_cast %76 : vector<1x4xf32> to vector<1x1x4xf32>
    %c0_39 = arith.constant 0 : index
    %c0_40 = arith.constant 0 : index
    %c0_41 = arith.constant 0 : index
    %78 = vector.load %arg9[%c0_39, %c0_40, %c0_41] : memref<1x1x4xf32, #tpu.memory_space<vmem>>, vector<1x1x4xf32>
    tpu.vector_store %arg9[%c0_39, %c0_40, %c0_41], %77 {strides = array<i32>} : memref<1x1x4xf32, #tpu.memory_space<vmem>>, vector<1x1x4xf32>,
    return
  }
  func.func @transform_0(%arg0: i32) -> (i32, i32) {
    %c0_i32 = arith.constant 0 : i32
    %c0_i32_0 = arith.constant 0 : i32
    return %arg0, %c0_i32 : i32, i32
  }
  func.func @transform_1(%arg0: i32) -> (i32, i32) {
    %c0_i32 = arith.constant 0 : i32
    %c0_i32_0 = arith.constant 0 : i32
    return %arg0, %c0_i32 : i32, i32
  }
  func.func @transform_2(%arg0: i32) -> (i32, i32) {
    %c0_i32 = arith.constant 0 : i32
    %c0_i32_0 = arith.constant 0 : i32
    %c0_i32_1 = arith.constant 0 : i32
    return %c0_i32, %c0_i32_0 : i32, i32
  }
  func.func @transform_3(%arg0: i32) -> (i32, i32) {
    %c0_i32 = arith.constant 0 : i32
    %c0_i32_0 = arith.constant 0 : i32
    %c0_i32_1 = arith.constant 0 : i32
    return %c0_i32, %c0_i32_0 : i32, i32
  }
  func.func @transform_4(%arg0: i32) -> (i32, i32) {
    %c0_i32 = arith.constant 0 : i32
    %c0_i32_0 = arith.constant 0 : i32
    %c0_i32_1 = arith.constant 0 : i32
    return %c0_i32, %c0_i32_0 : i32, i32
  }
  func.func @transform_5(%arg0: i32) -> (i32, i32) {
    %c0_i32 = arith.constant 0 : i32
    %c0_i32_0 = arith.constant 0 : i32
    %c0_i32_1 = arith.constant 0 : i32
    return %c0_i32, %c0_i32_0 : i32, i32
  }
  func.func @transform_6(%arg0: i32) -> (i32, i32) {
    %c0_i32 = arith.constant 0 : i32
    %c0_i32_0 = arith.constant 0 : i32
    %c0_i32_1 = arith.constant 0 : i32
    return %c0_i32, %c0_i32_0 : i32, i32
  }
  func.func @transform_7(%arg0: i32) -> (i32, i32) {
    %c0_i32 = arith.constant 0 : i32
    %c0_i32_0 = arith.constant 0 : i32
    %c0_i32_1 = arith.constant 0 : i32
    return %c0_i32, %c0_i32_0 : i32, i32
  }
  func.func @transform_8(%arg0: i32) -> (i32, i32, i32) {
    %c0_i32 = arith.constant 0 : i32
    %c0_i32_0 = arith.constant 0 : i32
    %c0_i32_1 = arith.constant 0 : i32
    return %arg0, %c0_i32, %c0_i32_0 : i32, i32, i32
  }
}

</mosaic_0001>

<llo_original>
// kernel: tpu_custom_call.1
$region0: #{tpu_custom_call.1}
  #allocation0 [shape = 'u32[]', space=smem, size = 0x4, offset = 0x4, fixed_abs, tag = 'smem constant byte address 0x4 - core index']
  #allocation1 [shape = 'u32[144,128]{1,0:T(1,128)}', space=vmem, size = 0x12000, scoped, tag = 'internal scratch']
  #allocation2 [shape = 'f32[1,1]{1,0:T(1,128)S(6)}', space=smem, size = 0x200, scoped, tag = 'scoped memory for tpu_custom_call.1']
  %s0 = inlined_call_operand.hbm [shape: f32[4,16], index: 0, kind: input, shape index: {}]
  %s1 = inlined_call_operand.hbm [shape: f32[4,8], index: 1, kind: input, shape index: {}]
  %s2 = inlined_call_operand.hbm [shape: f32[16,32], index: 2, kind: input, shape index: {}]
  %s3 = inlined_call_operand.hbm [shape: f32[3,32], index: 3, kind: input, shape index: {}]
  %s4 = inlined_call_operand.hbm [shape: f32[32,32], index: 4, kind: input, shape index: {}]
  %s5 = inlined_call_operand.vmem [shape: f32[8,32], index: 5, kind: input, shape index: {}]
  %s6 = inlined_call_operand.vmem [shape: f32[5,32], index: 6, kind: input, shape index: {}]
  %s7 = inlined_call_operand.<no memory space> [shape: f32[1,1], index: 7, kind: input, shape index: {}]
  %s8 = inlined_call_operand.hbm [shape: f32[1,1,4], index: 8, kind: output, shape index: {}]
  %s9 = sld [smem:[#allocation0]]
  $region62: #{tpu_custom_call.1} parent=0
    _
  %s11 = ssub.s32 1, %s9
  %s12 = scalar_select 0, %s11, %s9
  %13 = sst [smem:[#allocation2]] %s7
  $region1: #{tpu_custom_call.1} parent=0
    #allocation3 [shape = 'u8[2048]{0}', space=vmem, size = 0x800, scoped, tag = 'input window, operand 0, single buffered']
    #allocation4 [shape = 's32[1]{0}', space=sflag, size = 0x4, scoped, tag = 'scoped memory for tpu_custom_call.1']
    #allocation5 [shape = 's32[1]{0}', space=sflag, size = 0x4, scoped, tag = 'scoped memory for tpu_custom_call.1']
    #allocation6 [shape = 'u8[2048]{0}', space=vmem, size = 0x800, scoped, tag = 'input window, operand 1, single buffered']
    #allocation7 [shape = 's32[1]{0}', space=sflag, size = 0x4, scoped, tag = 'scoped memory for tpu_custom_call.1']
    #allocation8 [shape = 'u8[8192]{0}', space=vmem, size = 0x2000, scoped, tag = 'input window, operand 2, single buffered']
    #allocation9 [shape = 'u8[2048]{0}', space=vmem, size = 0x800, scoped, tag = 'input window, operand 3, single buffered']
    #allocation10 [shape = 's32[1]{0}', space=sflag, size = 0x4, scoped, tag = 'scoped memory for tpu_custom_call.1']
    #allocation11 [shape = 'u8[16384]{0}', space=vmem, size = 0x4000, scoped, tag = 'input window, operand 4, single buffered']
    #allocation12 [shape = 'u8[512]{0}', space=vmem, size = 0x400, scoped, tag = 'output window, operand 0, single buffered']
    %14 = vsyncpa [#allocation4], 0
    %15 = vsyncpa [#allocation7], 0
    %16 = vsyncpa [#allocation10], 0
    %17 = vsyncpa [#allocation5], 0
    // Predicated region
    $region2: #{tpu_custom_call.1} parent=1 // pred_check
      _
    $region3: #{tpu_custom_call.1} parent=1 // pred_check_branch
      %19 = sbr.rel (0) target = $region5
    $region4: #{tpu_custom_call.1} parent=1 // pred_region
      %s21 = ssub.s32 64, 64
      %22 = vsyncadd [#allocation4], %s21
      %s24 = sshll.u32 [#allocation3], 4
      %s25 = int_to_ptr.vmem [resolvable:$true] %s24
      %27 = dma.hbm_to_vmem [thread:$0]  %s0, 64, %s25, [#allocation4]
    $region5: #{tpu_custom_call.1} parent=1 // pred_fallthru
      _
    // Predicated region
    $region6: #{tpu_custom_call.1} parent=1 // pred_check
      _
    $region7: #{tpu_custom_call.1} parent=1 // pred_check_branch
      %29 = sbr.rel (0) target = $region9
    $region8: #{tpu_custom_call.1} parent=1 // pred_region
      %s31 = ssub.s32 64, 64
      %32 = vsyncadd [#allocation7], %s31
      %s34 = sshll.u32 [#allocation6], 4
      %s35 = int_to_ptr.vmem [resolvable:$true] %s34
      %37 = dma.hbm_to_vmem [thread:$0]  %s1, 64, %s35, [#allocation7]
    $region9: #{tpu_custom_call.1} parent=1 // pred_fallthru
      _
    // Predicated region
    $region10: #{tpu_custom_call.1} parent=1 // pred_check
      _
    $region11: #{tpu_custom_call.1} parent=1 // pred_check_branch
      %39 = sbr.rel (0) target = $region13
    $region12: #{tpu_custom_call.1} parent=1 // pred_region
      %s41 = ssub.s32 256, 256
      %42 = vsyncadd [#allocation7], %s41
      %s43 = sshll.u32 [#allocation8], 4
      %s44 = int_to_ptr.vmem [resolvable:$true] %s43
      %49 = dma.hbm_to_vmem [thread:$0]  %s2, 256, %s44, [#allocation7], 128, 128, 8
    $region13: #{tpu_custom_call.1} parent=1 // pred_fallthru
      _
    // Predicated region
    $region14: #{tpu_custom_call.1} parent=1 // pred_check
      _
    $region15: #{tpu_custom_call.1} parent=1 // pred_check_branch
      %51 = sbr.rel (0) target = $region17
    $region16: #{tpu_custom_call.1} parent=1 // pred_region
      %s53 = ssub.s32 64, 64
      %54 = vsyncadd [#allocation10], %s53
      %s56 = sshll.u32 [#allocation9], 4
      %s57 = int_to_ptr.vmem [resolvable:$true] %s56
      %59 = dma.hbm_to_vmem [thread:$0]  %s3, 64, %s57, [#allocation10]
    $region17: #{tpu_custom_call.1} parent=1 // pred_fallthru
      _
    // Predicated region
    $region18: #{tpu_custom_call.1} parent=1 // pred_check
      _
    $region19: #{tpu_custom_call.1} parent=1 // pred_check_branch
      %61 = sbr.rel (0) target = $region21
    $region20: #{tpu_custom_call.1} parent=1 // pred_region
      %s63 = ssub.s32 512, 512
      %64 = vsyncadd [#allocation10], %s63
      %s65 = sshll.u32 [#allocation11], 4
      %s66 = int_to_ptr.vmem [resolvable:$true] %s65
      %71 = dma.hbm_to_vmem [thread:$0]  %s4, 512, %s66, [#allocation10], 128, 128, 8
    $region21: #{tpu_custom_call.1} parent=1 // pred_fallthru
      _
    // Predicated region
    $region22: #{tpu_custom_call.1} parent=1 // pred_check
      _
    $region23: #{tpu_custom_call.1} parent=1 // pred_check_branch
      %73 = sbr.rel (0) target = $region25
    $region24: #{tpu_custom_call.1} parent=1 // pred_region
      _
    $region25: #{tpu_custom_call.1} parent=1 // pred_fallthru
      _
    // Predicated region
    $region26: #{tpu_custom_call.1} parent=1 // pred_check
      _
    $region27: #{tpu_custom_call.1} parent=1 // pred_check_branch
      %75 = sbr.rel (0) target = $region29
    $region28: #{tpu_custom_call.1} parent=1 // pred_region
      _
    $region29: #{tpu_custom_call.1} parent=1 // pred_fallthru
      _
    // Predicated region
    $region30: #{tpu_custom_call.1} parent=1 // pred_check
      _
    $region31: #{tpu_custom_call.1} parent=1 // pred_check_branch
      %77 = sbr.rel (0) target = $region33
    $region32: #{tpu_custom_call.1} parent=1 // pred_region
      _
    $region33: #{tpu_custom_call.1} parent=1 // pred_fallthru
      _
    // Predicated region
    $region34: #{tpu_custom_call.1} parent=1 // pred_check
      _
    $region35: #{tpu_custom_call.1} parent=1 // pred_check_branch
      %79 = sbr.rel (0) target = $region37
    $region36: #{tpu_custom_call.1} parent=1 // pred_region
      %80 = dma.done [#allocation4], 64
    $region37: #{tpu_custom_call.1} parent=1 // pred_fallthru
      _
    // Predicated region
    $region38: #{tpu_custom_call.1} parent=1 // pred_check
      _
    $region39: #{tpu_custom_call.1} parent=1 // pred_check_branch
      %82 = sbr.rel (0) target = $region41
    $region40: #{tpu_custom_call.1} parent=1 // pred_region
      %83 = dma.done [#allocation7], 64
    $region41: #{tpu_custom_call.1} parent=1 // pred_fallthru
      _
    // Predicated region
    $region42: #{tpu_custom_call.1} parent=1 // pred_check
      _
    $region43: #{tpu_custom_call.1} parent=1 // pred_check_branch
      %85 = sbr.rel (0) target = $region45
    $region44: #{tpu_custom_call.1} parent=1 // pred_region
      %86 = dma.done [#allocation7], 256
    $region45: #{tpu_custom_call.1} parent=1 // pred_fallthru
      _
    // Predicated region
    $region46: #{tpu_custom_call.1} parent=1 // pred_check
      _
    $region47: #{tpu_custom_call.1} parent=1 // pred_check_branch
      %88 = sbr.rel (0) target = $region49
    $region48: #{tpu_custom_call.1} parent=1 // pred_region
      %89 = dma.done [#allocation10], 64
    $region49: #{tpu_custom_call.1} parent=1 // pred_fallthru
      _
    // Predicated region
    $region50: #{tpu_custom_call.1} parent=1 // pred_check
      _
    $region51: #{tpu_custom_call.1} parent=1 // pred_check_branch
      %91 = sbr.rel (0) target = $region53
    $region52: #{tpu_custom_call.1} parent=1 // pred_region
      %92 = dma.done [#allocation10], 512
    $region53: #{tpu_custom_call.1} parent=1 // pred_fallthru
      _
    %v93 = vld [vmem:[#allocation3] sm:$0xf]
    %v94 = vld [vmem:[#allocation6] sm:$0xf]
    %v95 = vld [vmem:[#allocation9] sm:$0x1]
    %v96 = vld [vmem:[#allocation9 + $0x1] sm:$0x1]
    %v97 = vld [vmem:[#allocation9 + $0x2] sm:$0x1]
    %v98 = vld [vmem:[%s6] sm:$0x1]
    %v99 = vld [vmem:[%s6 + $0x1] sm:$0x1]
    %v100 = vld [vmem:[%s6 + $0x2] sm:$0x1]
    %v101 = vld [vmem:[%s6 + $0x3] sm:$0x1]
    %v102 = vld [vmem:[%s6 + $0x4] sm:$0x1]
    %v103 = vld [vmem:[#allocation8] sm:$0xff]
    %v104 = vld [vmem:[#allocation8 + $0x8] sm:$0xff]
    %v105 = vlaneseq
    %v106 = vshrl.u32 %v105, 7
    %v107 = vsub.s32 0, %v106
    %v108 = vrot.slane %v95, %v107
    %vm109 = vcmask 130048
    %v111 = vsel %vm109, %v93, 0
    %113 = vmatprep.subr.mxu0 0.0
    %114 = vmatpush1.msra.mxu0 %v103
    %115 = vmatprep.subr.mxu0 0.0
    %116 = vmatpush1.msra.mxu0 %v104
    %117 = vmatprep.subr.mxu0 0.0
    %118 = vmatpush1.msra.mxu0 0.0
    %119 = vmatprep.subr.mxu0 0.0
    %120 = vmatpush1.msra.mxu0 0.0
    %121 = vmatprep.subr.mxu0 0.0
    %122 = vmatpush1.msra.mxu0 0.0
    %123 = vmatprep.subr.mxu0 0.0
    %124 = vmatpush1.msra.mxu0 0.0
    %125 = vmatprep.subr.mxu0 0.0
    %126 = vmatpush1.msra.mxu0 0.0
    %127 = vmatprep.subr.mxu0 0.0
    %128 = vmatpush1.msra.mxu0 0.0
    %129 = vmatprep.subr.mxu0 0.0
    %130 = vmatpush1.msra.mxu0 0.0
    %131 = vmatprep.subr.mxu0 0.0
    %132 = vmatpush1.msra.mxu0 0.0
    %133 = vmatprep.subr.mxu0 0.0
    %134 = vmatpush1.msra.mxu0 0.0
    %135 = vmatprep.subr.mxu0 0.0
    %136 = vmatpush1.msra.mxu0 0.0
    %137 = vmatprep.subr.mxu0 0.0
    %138 = vmatpush1.msra.mxu0 0.0
    %139 = vmatprep.subr.mxu0 0.0
    %140 = vmatpush1.msra.mxu0 0.0
    %141 = vmatprep.subr.mxu0 0.0
    %142 = vmatpush1.msra.mxu0 0.0
    %143 = vmatprep.subr.mxu0 0.0
    %144 = vmatpush1.msra.mxu0 0.0
    %145 = vmatprep.subr.mxu0 0.0
    %146 = vmatpush1.msra.mxu0 0.0
    %147 = vmatprep.subr.mxu0 0.0
    %148 = vmatpush1.msra.mxu0 0.0
    %149 = vmatprep.subr.mxu0 0.0
    %150 = vmatpush1.msra.mxu0 0.0
    %151 = vmatprep.subr.mxu0 0.0
    %152 = vmatpush1.msra.mxu0 0.0
    %153 = vmatprep.subr.mxu0 0.0
    %154 = vmatpush1.msra.mxu0 0.0
    %155 = vmatprep.subr.mxu0 0.0
    %156 = vmatpush1.msra.mxu0 0.0
    %157 = vmatprep.subr.mxu0 0.0
    %158 = vmatpush1.msra.mxu0 0.0
    %159 = vmatprep.subr.mxu0 0.0
    %160 = vmatpush1.msra.mxu0 0.0
    %161 = vmatprep.subr.mxu0 0.0
    %162 = vmatpush1.msra.mxu0 0.0
    %163 = vmatprep.subr.mxu0 0.0
    %164 = vmatpush1.msra.mxu0 0.0
    %165 = vmatprep.subr.mxu0 0.0
    %166 = vmatpush1.msra.mxu0 0.0
    %167 = vmatprep.subr.mxu0 0.0
    %168 = vmatpush1.msra.mxu0 0.0
    %169 = vmatprep.subr.mxu0 0.0
    %170 = vmatpush1.msra.mxu0 0.0
    %171 = vmatprep.subr.mxu0 0.0
    %172 = vmatpush1.msra.mxu0 0.0
    %173 = vmatprep.subr.mxu0 0.0
    %174 = vmatpush1.msra.mxu0 0.0
    %175 = vmatprep.subr.mxu0 0.0
    %176 = vmatpush1.msra.mxu0 0.0
    %177 = vmatprep.mubr.f32.mxu0 0.0
    %178 = vmatmul.mubr.f32.gmra.mrb[0].mxu0 %v111
    %v179 = vpop.f32.mrb[0].mxu0
    %v180 = vadd.f32 %v108, %v179
    %v181 = vpop.f32.mrb[0].mxu0
    %182 = vdwg.mxu0
    %vm183 = vcmask 257024
    %v184 = vsel %vm183, %v180, 0.0
    %185 = vadd.xlane.f32.xlu0 %v184
    %v186 = vpop.xlane.xlu0 %185
    %v187 = vmul.f32 %v186, 0.03125
    %v188 = vmul.f32 %v180, %v180
    %v189 = vsel %vm183, %v188, 0.0
    %190 = vadd.xlane.f32.xlu0 %v189
    %v191 = vpop.xlane.xlu0 %190
    %v192 = vmul.f32 %v191, 0.03125
    %v193 = vmul.f32 %v187, %v187
    %v194 = vsub.f32 %v192, %v193
    %v195 = vadd.f32 %v194, 1e-05
    %v196 = vrsqrt.pop %v195
    %v197 = vsub.f32 %v180, %v187
    %v198 = vmul.f32 %v197, %v196
    %v199 = vlaneseq
    %v200 = vshrl.u32 %v199, 7
    %v201 = vsub.s32 0, %v200
    %v202 = vrot.slane %v96, %v201
    %v203 = vmul.f32 %v198, %v202
    %v204 = vlaneseq
    %v205 = vshrl.u32 %v204, 7
    %v206 = vsub.s32 0, %v205
    %v207 = vrot.slane %v97, %v206
    %v208 = vadd.f32 %v203, %v207
    %v209 = vmax.f32 %v208, 0.0
    %v210 = vld [vmem:[#allocation11] sm:$0xff]
    %v211 = vld [vmem:[#allocation11 + $0x8] sm:$0xff]
    %v212 = vld [vmem:[#allocation11 + $0x10] sm:$0xff]
    %v213 = vld [vmem:[#allocation11 + $0x18] sm:$0xff]
    %v214 = vlaneseq
    %v215 = vshrl.u32 %v214, 7
    %v216 = vsub.s32 0, %v215
    %v217 = vrot.slane %v98, %v216
    %vm218 = vcmask 261120
    %v220 = vsel %vm218, %v209, 0
    %222 = vmatprep.subr.mxu0 0.0
    %223 = vmatpush1.msra.mxu0 %v210
    %224 = vmatprep.subr.mxu0 0.0
    %225 = vmatpush1.msra.mxu0 %v211
    %226 = vmatprep.subr.mxu0 0.0
    %227 = vmatpush1.msra.mxu0 %v212
    %228 = vmatprep.subr.mxu0 0.0
    %229 = vmatpush1.msra.mxu0 %v213
    %230 = vmatprep.subr.mxu0 0.0
    %231 = vmatpush1.msra.mxu0 0.0
    %232 = vmatprep.subr.mxu0 0.0
    %233 = vmatpush1.msra.mxu0 0.0
    %234 = vmatprep.subr.mxu0 0.0
    %235 = vmatpush1.msra.mxu0 0.0
    %236 = vmatprep.subr.mxu0 0.0
    %237 = vmatpush1.msra.mxu0 0.0
    %238 = vmatprep.subr.mxu0 0.0
    %239 = vmatpush1.msra.mxu0 0.0
    %240 = vmatprep.subr.mxu0 0.0
    %241 = vmatpush1.msra.mxu0 0.0
    %242 = vmatprep.subr.mxu0 0.0
    %243 = vmatpush1.msra.mxu0 0.0
    %244 = vmatprep.subr.mxu0 0.0
    %245 = vmatpush1.msra.mxu0 0.0
    %246 = vmatprep.subr.mxu0 0.0
    %247 = vmatpush1.msra.mxu0 0.0
    %248 = vmatprep.subr.mxu0 0.0
    %249 = vmatpush1.msra.mxu0 0.0
    %250 = vmatprep.subr.mxu0 0.0
    %251 = vmatpush1.msra.mxu0 0.0
    %252 = vmatprep.subr.mxu0 0.0
    %253 = vmatpush1.msra.mxu0 0.0
    %254 = vmatprep.subr.mxu0 0.0
    %255 = vmatpush1.msra.mxu0 0.0
    %256 = vmatprep.subr.mxu0 0.0
    %257 = vmatpush1.msra.mxu0 0.0
    %258 = vmatprep.subr.mxu0 0.0
    %259 = vmatpush1.msra.mxu0 0.0
    %260 = vmatprep.subr.mxu0 0.0
    %261 = vmatpush1.msra.mxu0 0.0
    %262 = vmatprep.subr.mxu0 0.0
    %263 = vmatpush1.msra.mxu0 0.0
    %264 = vmatprep.subr.mxu0 0.0
    %265 = vmatpush1.msra.mxu0 0.0
    %266 = vmatprep.subr.mxu0 0.0
    %267 = vmatpush1.msra.mxu0 0.0
    %268 = vmatprep.subr.mxu0 0.0
    %269 = vmatpush1.msra.mxu0 0.0
    %270 = vmatprep.subr.mxu0 0.0
    %271 = vmatpush1.msra.mxu0 0.0
    %272 = vmatprep.subr.mxu0 0.0
    %273 = vmatpush1.msra.mxu0 0.0
    %274 = vmatprep.subr.mxu0 0.0
    %275 = vmatpush1.msra.mxu0 0.0
    %276 = vmatprep.subr.mxu0 0.0
    %277 = vmatpush1.msra.mxu0 0.0
    %278 = vmatprep.subr.mxu0 0.0
    %279 = vmatpush1.msra.mxu0 0.0
    %280 = vmatprep.subr.mxu0 0.0
    %281 = vmatpush1.msra.mxu0 0.0
    %282 = vmatprep.subr.mxu0 0.0
    %283 = vmatpush1.msra.mxu0 0.0
    %284 = vmatprep.subr.mxu0 0.0
    %285 = vmatpush1.msra.mxu0 0.0
    %286 = vmatprep.mubr.f32.mxu0 0.0
    %287 = vmatmul.mubr.f32.gmra.mrb[0].mxu0 %v220
    %v288 = vpop.f32.mrb[0].mxu0
    %v289 = vadd.f32 %v217, %v288
    %v290 = vpop.f32.mrb[0].mxu0
    %291 = vdwg.mxu0
    %v292 = vsel %vm183, %v289, 0.0
    %293 = vadd.xlane.f32.xlu0 %v292
    %v294 = vpop.xlane.xlu0 %293
    %v295 = vmul.f32 %v294, 0.03125
    %v296 = vmul.f32 %v289, %v289
    %v297 = vsel %vm183, %v296, 0.0
    %298 = vadd.xlane.f32.xlu0 %v297
    %v299 = vpop.xlane.xlu0 %298
    %v300 = vmul.f32 %v299, 0.03125
    %v301 = vmul.f32 %v295, %v295
    %v302 = vsub.f32 %v300, %v301
    %v303 = vadd.f32 %v302, 1e-05
    %v304 = vrsqrt.pop %v303
    %v305 = vsub.f32 %v289, %v295
    %v306 = vmul.f32 %v305, %v304
    %v307 = vlaneseq
    %v308 = vshrl.u32 %v307, 7
    %v309 = vsub.s32 0, %v308
    %v310 = vrot.slane %v99, %v309
    %v311 = vmul.f32 %v306, %v310
    %v312 = vlaneseq
    %v313 = vshrl.u32 %v312, 7
    %v314 = vsub.s32 0, %v313
    %v315 = vrot.slane %v100, %v314
    %v316 = vadd.f32 %v311, %v315
    %v317 = vld [vmem:[%s5] sm:$0xff]
    %v318 = vlaneseq
    %v319 = vshrl.u32 %v318, 7
    %v320 = vsub.s32 0, %v319
    %v321 = vrot.slane %v101, %v320
    %vm322 = vcmask 64512
    %v324 = vsel %vm322, %v94, 0
    %326 = vmatprep.subr.mxu0 0.0
    %327 = vmatpush1.msra.mxu0 %v317
    %328 = vmatprep.subr.mxu0 0.0
    %329 = vmatpush1.msra.mxu0 0.0
    %330 = vmatprep.subr.mxu0 0.0
    %331 = vmatpush1.msra.mxu0 0.0
    %332 = vmatprep.subr.mxu0 0.0
    %333 = vmatpush1.msra.mxu0 0.0
    %334 = vmatprep.subr.mxu0 0.0
    %335 = vmatpush1.msra.mxu0 0.0
    %336 = vmatprep.subr.mxu0 0.0
    %337 = vmatpush1.msra.mxu0 0.0
    %338 = vmatprep.subr.mxu0 0.0
    %339 = vmatpush1.msra.mxu0 0.0
    %340 = vmatprep.subr.mxu0 0.0
    %341 = vmatpush1.msra.mxu0 0.0
    %342 = vmatprep.subr.mxu0 0.0
    %343 = vmatpush1.msra.mxu0 0.0
    %344 = vmatprep.subr.mxu0 0.0
    %345 = vmatpush1.msra.mxu0 0.0
    %346 = vmatprep.subr.mxu0 0.0
    %347 = vmatpush1.msra.mxu0 0.0
    %348 = vmatprep.subr.mxu0 0.0
    %349 = vmatpush1.msra.mxu0 0.0
    %350 = vmatprep.subr.mxu0 0.0
    %351 = vmatpush1.msra.mxu0 0.0
    %352 = vmatprep.subr.mxu0 0.0
    %353 = vmatpush1.msra.mxu0 0.0
    %354 = vmatprep.subr.mxu0 0.0
    %355 = vmatpush1.msra.mxu0 0.0
    %356 = vmatprep.subr.mxu0 0.0
    %357 = vmatpush1.msra.mxu0 0.0
    %358 = vmatprep.subr.mxu0 0.0
    %359 = vmatpush1.msra.mxu0 0.0
    %360 = vmatprep.subr.mxu0 0.0
    %361 = vmatpush1.msra.mxu0 0.0
    %362 = vmatprep.subr.mxu0 0.0
    %363 = vmatpush1.msra.mxu0 0.0
    %364 = vmatprep.subr.mxu0 0.0
    %365 = vmatpush1.msra.mxu0 0.0
    %366 = vmatprep.subr.mxu0 0.0
    %367 = vmatpush1.msra.mxu0 0.0
    %368 = vmatprep.subr.mxu0 0.0
    %369 = vmatpush1.msra.mxu0 0.0
    %370 = vmatprep.subr.mxu0 0.0
    %371 = vmatpush1.msra.mxu0 0.0
    %372 = vmatprep.subr.mxu0 0.0
    %373 = vmatpush1.msra.mxu0 0.0
    %374 = vmatprep.subr.mxu0 0.0
    %375 = vmatpush1.msra.mxu0 0.0
    %376 = vmatprep.subr.mxu0 0.0
    %377 = vmatpush1.msra.mxu0 0.0
    %378 = vmatprep.subr.mxu0 0.0
    %379 = vmatpush1.msra.mxu0 0.0
    %380 = vmatprep.subr.mxu0 0.0
    %381 = vmatpush1.msra.mxu0 0.0
    %382 = vmatprep.subr.mxu0 0.0
    %383 = vmatpush1.msra.mxu0 0.0
    %384 = vmatprep.subr.mxu0 0.0
    %385 = vmatpush1.msra.mxu0 0.0
    %386 = vmatprep.subr.mxu0 0.0
    %387 = vmatpush1.msra.mxu0 0.0
    %388 = vmatprep.subr.mxu0 0.0
    %389 = vmatpush1.msra.mxu0 0.0
    %390 = vmatprep.mubr.f32.mxu0 0.0
    %391 = vmatmul.mubr.f32.gmra.mrb[0].mxu0 %v324
    %v392 = vpop.f32.mrb[0].mxu0
    %v393 = vadd.f32 %v321, %v392
    %v394 = vpop.f32.mrb[0].mxu0
    %395 = vdwg.mxu0
    %v396 = vmax.f32 %v393, 0.0
    %v397 = vadd.f32 %v316, %v396
    %v398 = vmax.f32 %v397, 0.0
    %s399 = sld [smem:[#allocation2]]
    %v400 = vstv %s399
    %v402 = vsel %vm218, %v102, 0
    %v405 = vsel %vm218, %v398, 0
    %407 = vmatprep.subr.mxu0 0.0
    %408 = vmatpush1.xpose.msra.mxu0 %v405
    %409 = vmatprep.subr.mxu0 0.0
    %410 = vmatpush1.xpose.msra.mxu0 0.0
    %411 = vmatprep.subr.mxu0 0.0
    %412 = vmatpush1.xpose.msra.mxu0 0.0
    %413 = vmatprep.subr.mxu0 0.0
    %414 = vmatpush1.xpose.msra.mxu0 0.0
    %415 = vmatprep.subr.mxu0 0.0
    %416 = vmatpush1.xpose.msra.mxu0 0.0
    %417 = vmatprep.subr.mxu0 0.0
    %418 = vmatpush1.xpose.msra.mxu0 0.0
    %419 = vmatprep.subr.mxu0 0.0
    %420 = vmatpush1.xpose.msra.mxu0 0.0
    %421 = vmatprep.subr.mxu0 0.0
    %422 = vmatpush1.xpose.msra.mxu0 0.0
    %423 = vmatprep.subr.mxu0 0.0
    %424 = vmatpush1.xpose.msra.mxu0 0.0
    %425 = vmatprep.subr.mxu0 0.0
    %426 = vmatpush1.xpose.msra.mxu0 0.0
    %427 = vmatprep.subr.mxu0 0.0
    %428 = vmatpush1.xpose.msra.mxu0 0.0
    %429 = vmatprep.subr.mxu0 0.0
    %430 = vmatpush1.xpose.msra.mxu0 0.0
    %431 = vmatprep.subr.mxu0 0.0
    %432 = vmatpush1.xpose.msra.mxu0 0.0
    %433 = vmatprep.subr.mxu0 0.0
    %434 = vmatpush1.xpose.msra.mxu0 0.0
    %435 = vmatprep.subr.mxu0 0.0
    %436 = vmatpush1.xpose.msra.mxu0 0.0
    %437 = vmatprep.subr.mxu0 0.0
    %438 = vmatpush1.xpose.msra.mxu0 0.0
    %439 = vmatprep.subr.mxu0 0.0
    %440 = vmatpush1.xpose.msra.mxu0 0.0
    %441 = vmatprep.subr.mxu0 0.0
    %442 = vmatpush1.xpose.msra.mxu0 0.0
    %443 = vmatprep.subr.mxu0 0.0
    %444 = vmatpush1.xpose.msra.mxu0 0.0
    %445 = vmatprep.subr.mxu0 0.0
    %446 = vmatpush1.xpose.msra.mxu0 0.0
    %447 = vmatprep.subr.mxu0 0.0
    %448 = vmatpush1.xpose.msra.mxu0 0.0
    %449 = vmatprep.subr.mxu0 0.0
    %450 = vmatpush1.xpose.msra.mxu0 0.0
    %451 = vmatprep.subr.mxu0 0.0
    %452 = vmatpush1.xpose.msra.mxu0 0.0
    %453 = vmatprep.subr.mxu0 0.0
    %454 = vmatpush1.xpose.msra.mxu0 0.0
    %455 = vmatprep.subr.mxu0 0.0
    %456 = vmatpush1.xpose.msra.mxu0 0.0
    %457 = vmatprep.subr.mxu0 0.0
    %458 = vmatpush1.xpose.msra.mxu0 0.0
    %459 = vmatprep.subr.mxu0 0.0
    %460 = vmatpush1.xpose.msra.mxu0 0.0
    %461 = vmatprep.subr.mxu0 0.0
    %462 = vmatpush1.xpose.msra.mxu0 0.0
    %463 = vmatprep.subr.mxu0 0.0
    %464 = vmatpush1.xpose.msra.mxu0 0.0
    %465 = vmatprep.subr.mxu0 0.0
    %466 = vmatpush1.xpose.msra.mxu0 0.0
    %467 = vmatprep.subr.mxu0 0.0
    %468 = vmatpush1.xpose.msra.mxu0 0.0
    %469 = vmatprep.subr.mxu0 0.0
    %470 = vmatpush1.xpose.msra.mxu0 0.0
    %471 = vmatprep.mubr.f32.mxu0 0.0
    %472 = vmatmul.mubr.f32.gmra.mrb[0].mxu0 %v402
    %v473 = vpop.f32.mrb[0].mxu0
    %v474 = vadd.f32 %v400, %v473
    %v475 = vpop.f32.mrb[0].mxu0
    %476 = vdwg.mxu0
    %vm477 = vcmask 24576
    %478 = vst.msk [vmem:[#allocation12] sm:$0x1] %vm477, %v474
    // Predicated region
    $region54: #{tpu_custom_call.1} parent=1 // pred_check
      _
    $region55: #{tpu_custom_call.1} parent=1 // pred_check_branch
      %480 = sbr.rel (0) target = $region57
    $region56: #{tpu_custom_call.1} parent=1 // pred_region
      %s482 = ssub.s32 16, 16
      %483 = vsyncadd [#allocation5], %s482
      %s485 = sshll.u32 [#allocation12], 4
      %s486 = int_to_ptr.vmem [resolvable:$true] %s485
      %488 = dma.vmem_to_hbm [thread:$0]  %s486, 16, %s8, [#allocation5]
    $region57: #{tpu_custom_call.1} parent=1 // pred_fallthru
      _
    // Predicated region
    $region58: #{tpu_custom_call.1} parent=1 // pred_check
      _
    $region59: #{tpu_custom_call.1} parent=1 // pred_check_branch
      %490 = sbr.rel (0) target = $region61
    $region60: #{tpu_custom_call.1} parent=1 // pred_region
      %491 = dma.done [#allocation5], 16
    $region61: #{tpu_custom_call.1} parent=1 // pred_fallthru
      _
    %492 = vsyncpa [#allocation4], 1
    %493 = vsyncpa [#allocation7], 1
    %494 = vsyncpa [#allocation10], 1
    %495 = vsyncpa [#allocation5], 1

</llo_original>
